<compile_context>
chip_gen: v5e
topology: v5e:2x2
jax: 0.10.0
libtpu: 0.0.40
codegen_flags: <defaults>
</compile_context>

<pallas_src>
import functools
import math

import jax
import jax.numpy as jnp
from jax.experimental import pallas as pl
from jax.experimental.pallas import tpu as pltpu

# ----- problem sizes ---------------------------------------------------------
BATCH = 2
C_IN = 8
D_MODEL = 128          # lane-dense output (multiple of 128 lanes)
NUM_SNAPSHOT = 16      # sequence length L
KERNEL_SIZE = 3


def _token_embedding_kernel(x_ref, wb_ref, o_ref, *, pad_rows):
    """All batch elements of one block in a single MXU matmul.
       x_ref : [BB, Lx, C]      (Lx rows of real data; pad_rows appended here)
       wb_ref: [3*C + 1, D]     rows 0..3C-1 = stacked weight, row 3C = bias
       o_ref : [BB, L, D]       L = Lx + pad_rows"""
    BB, _, C = x_ref.shape
    L = o_ref.shape[1]
    D = o_ref.shape[2]
    K3 = KERNEL_SIZE * C

    w = wb_ref[:K3, :]            # [3C, D]
    bias = wb_ref[K3:K3 + 1, :]   # [1, D]  (folded bias row)

    taps = []
    for b in range(BB):           # static unroll; batch block is tiny
        xb = x_ref[b]             # [Lx, C]
        if pad_rows:
            # padding=True path: zero rows appended in VMEM (no wrapper concat)
            xb = jnp.concatenate(
                [xb, jnp.zeros((pad_rows, C), xb.dtype)], axis=0)      # [L, C]
        # circular taps x[t-1], x[t], x[t+1] via sublane rotations (XLU slot)
        x_prev = pltpu.roll(xb, shift=1, axis=0)        # x[(t-1) % L]
        x_next = pltpu.roll(xb, shift=L - 1, axis=0)    # x[(t+1) % L]
        taps.append(jnp.concatenate([x_prev, xb, x_next], axis=-1))    # [L, 3C]

    x_cat = jnp.concatenate(taps, axis=0)               # [BB*L, 3C]
    y = jnp.dot(x_cat, w, preferred_element_type=jnp.float32) + bias   # [BB*L, D]
    o_ref[...] = y.reshape(BB, L, D).astype(o_ref.dtype)


def token_embedding_forward(x, w_bias, *, number_of_snapshot, padding=False,
                            batch_block=None):
    """x: [B, cur_len, c_in] f32 -> [B, L', d_model],
       L' = cur_len (padding=False) or number_of_snapshot (padding=True),
       matching TokenEmbeddingWrapper.forward (pad with zeros, then circular conv)."""
    B, cur_len, C = x.shape
    K3 = w_bias.shape[0] - 1
    D = w_bias.shape[-1]

    if padding:
        L = number_of_snapshot
        pad_rows = L - cur_len
    else:
        L = cur_len
        pad_rows = 0

    # One grid step covers `bb` batch elements; at B=2 the whole batch runs in a
    # single step (per-step prologue/epilogue ~0.35 us dominates at these sizes).
    # If B grows, bump batch_block (e.g. 8) to fill MXU rows and, on v7x, mark
    # this axis pltpu.CORE_PARALLEL to actually use both TensorCores.
    bb = batch_block or min(B, 8)
    assert B % bb == 0, "batch must be divisible by the batch block"
    num_steps = B // bb

    kernel = functools.partial(_token_embedding_kernel, pad_rows=pad_rows)

    # Grid-invariant weight: single-buffer it when the grid actually iterates.
    w_spec_kwargs = {}
    if num_steps > 1:
        w_spec_kwargs = dict(pipeline_mode=pl.Buffered(1))

    itemsize = jnp.dtype(x.dtype).itemsize
    cost = pl.CostEstimate(
        flops=2 * B * L * K3 * D,
        transcendentals=0,
        bytes_accessed=(x.size * itemsize
                        + w_bias.size * jnp.dtype(w_bias.dtype).itemsize
                        + B * L * D * 4),
    )

    return pl.pallas_call(
        kernel,
        out_shape=jax.ShapeDtypeStruct((B, L, D), jnp.float32),
        grid=(num_steps,),
        in_specs=[
            pl.BlockSpec((bb, cur_len, C), lambda i: (i, 0, 0)),   # batch block
            pl.BlockSpec((K3 + 1, D), lambda i: (0, 0),            # weight+bias
                         **w_spec_kwargs),
        ],
        out_specs=pl.BlockSpec((bb, L, D), lambda i: (i, 0, 0)),
        compiler_params=pltpu.CompilerParams(
            dimension_semantics=("arbitrary",)),
        cost_estimate=cost,
    )(x, w_bias)


def init_params(key):
    """Matches nn.Conv1d(c_in, d_model, 3): kaiming_normal_(fan_in, leaky_relu)
       weight, default uniform bias.  The weight is pre-stacked ONCE into the
       [3*c_in, d_model] matmul layout and the bias folded in as the final row,
       so the per-forward path has a single weight stream and no re-layout."""
    kw, kb = jax.random.split(key)
    fan_in = C_IN * KERNEL_SIZE
    gain = math.sqrt(2.0 / (1.0 + 0.01 ** 2))        # leaky_relu gain, slope 0.01
    std = gain / math.sqrt(fan_in)
    # conv weight in PyTorch layout [d_model, c_in, k]
    w_conv = std * jax.random.normal(kw, (D_MODEL, C_IN, KERNEL_SIZE), jnp.float32)
    # -> stacked [k*c_in, d_model]: row (k*C + c) multiplies tap k, channel c
    w_stack = jnp.transpose(w_conv, (2, 1, 0)).reshape(KERNEL_SIZE * C_IN, D_MODEL)
    bound = 1.0 / math.sqrt(fan_in)
    bias = jax.random.uniform(kb, (1, D_MODEL), jnp.float32, -bound, bound)
    return jnp.concatenate([w_stack, bias], axis=0)   # [3*c_in + 1, d_model]


def _reference(x, w_bias, *, number_of_snapshot=None, padding=False):
    """Pure-JAX reference of the same padded circular conv (correctness check)."""
    if padding:
        b, cur, c = x.shape
        x = jnp.concatenate(
            [x, jnp.zeros((b, number_of_snapshot - cur, c), x.dtype)], axis=1)
    k3 = w_bias.shape[0] - 1
    w, bias = w_bias[:k3], w_bias[k3:]
    x_prev = jnp.roll(x, 1, axis=1)
    x_next = jnp.roll(x, -1, axis=1)
    x_cat = jnp.concatenate([x_prev, x, x_next], axis=-1)
    return jnp.einsum("blk,kd->bld", x_cat, w) + bias


if __name__ == "__main__":
    key = jax.random.PRNGKey(0)
    k_x, k_p = jax.random.split(key)

    x = jax.random.normal(k_x, (BATCH, NUM_SNAPSHOT, C_IN), jnp.float32)
    w_bias = init_params(k_p)

    # padding=False path
    out = token_embedding_forward(
        x, w_bias, number_of_snapshot=NUM_SNAPSHOT, padding=False)
    jax.block_until_ready(out)
    assert out.shape == (BATCH, NUM_SNAPSHOT, D_MODEL) and out.dtype == jnp.float32
    ref = _reference(x, w_bias)
    assert jnp.allclose(out, ref, atol=1e-5, rtol=1e-5), \
        float(jnp.abs(out - ref).max())

    # padding=True path: shorter sequence zero-padded in-kernel to NUM_SNAPSHOT
    x_short = x[:, : NUM_SNAPSHOT - 4, :]
    out_pad = token_embedding_forward(
        x_short, w_bias, number_of_snapshot=NUM_SNAPSHOT, padding=True)
    jax.block_until_ready(out_pad)
    assert out_pad.shape == (BATCH, NUM_SNAPSHOT, D_MODEL)
    ref_pad = _reference(x_short, w_bias,
                         number_of_snapshot=NUM_SNAPSHOT, padding=True)
    assert jnp.allclose(out_pad, ref_pad, atol=1e-5, rtol=1e-5), \
        float(jnp.abs(out_pad - ref_pad).max())

    print("KERNEL_OK")
</pallas_src>

<mosaic_0001>
module attributes {stable_mosaic.version = 11 : i64} {
  func.func @_token_embedding_kernel(%arg0: i32, %arg1: memref<2x16x8xf32, #tpu.memory_space<vmem>>, %arg2: memref<25x128xf32, #tpu.memory_space<vmem>>, %arg3: memref<2x16x128xf32, #tpu.memory_space<vmem>>) attributes {dimension_semantics = [#tpu.dimension_semantics<arbitrary>], iteration_bounds = array<i64: 1>, scalar_prefetch = 0 : i64, scratch_operands = 0 : i64, tpu.core_type = #tpu.core_type<tc>, window_params = [{transform_indices = @transform_0, window_bounds = array<i64: 2, 16, 8>}, {pipeline_mode = #tpu.pipeline_mode<synchronous>, transform_indices = @transform_1, window_bounds = array<i64: 25, 128>}, {transform_indices = @transform_2, window_bounds = array<i64: 2, 16, 128>}]} {
    %c0 = arith.constant 0 : index
    %c0_0 = arith.constant 0 : index
    %0 = vector.load %arg2[%c0, %c0_0] : memref<25x128xf32, #tpu.memory_space<vmem>>, vector<24x128xf32>
    %c24 = arith.constant 24 : index
    %c0_1 = arith.constant 0 : index
    %1 = vector.load %arg2[%c24, %c0_1] : memref<25x128xf32, #tpu.memory_space<vmem>>, vector<1x128xf32>
    %c0_2 = arith.constant 0 : index
    %c0_3 = arith.constant 0 : index
    %c0_4 = arith.constant 0 : index
    %2 = vector.load %arg1[%c0_2, %c0_3, %c0_4] : memref<2x16x8xf32, #tpu.memory_space<vmem>>, vector<1x16x8xf32>
    %3 = vector.shape_cast %2 : vector<1x16x8xf32> to vector<16x8xf32>
    %c1_i32 = arith.constant 1 : i32
    %4 = tpu.dynamic_rotate %3 by %c1_i32 dim 0 : vector<16x8xf32>, i32 -> vector<16x8xf32>
    %c15_i32 = arith.constant 15 : i32
    %5 = tpu.dynamic_rotate %3 by %c15_i32 dim 0 : vector<16x8xf32>, i32 -> vector<16x8xf32>
    %6 = tpu.concatenate %4, %3, %5 in 1 : vector<16x8xf32>, vector<16x8xf32>, vector<16x8xf32> -> vector<16x24xf32>
    %c1 = arith.constant 1 : index
    %c0_5 = arith.constant 0 : index
    %c0_6 = arith.constant 0 : index
    %7 = vector.load %arg1[%c1, %c0_5, %c0_6] : memref<2x16x8xf32, #tpu.memory_space<vmem>>, vector<1x16x8xf32>
    %8 = vector.shape_cast %7 : vector<1x16x8xf32> to vector<16x8xf32>
    %c1_i32_7 = arith.constant 1 : i32
    %9 = tpu.dynamic_rotate %8 by %c1_i32_7 dim 0 : vector<16x8xf32>, i32 -> vector<16x8xf32>
    %c15_i32_8 = arith.constant 15 : i32
    %10 = tpu.dynamic_rotate %8 by %c15_i32_8 dim 0 : vector<16x8xf32>, i32 -> vector<16x8xf32>
    %11 = tpu.concatenate %9, %8, %10 in 1 : vector<16x8xf32>, vector<16x8xf32>, vector<16x8xf32> -> vector<16x24xf32>
    %12 = tpu.concatenate %6, %11 in 0 : vector<16x24xf32>, vector<16x24xf32> -> vector<32x24xf32>
    %cst = arith.constant dense<0.000000e+00> : vector<32x128xf32>
    %13 = tpu.matmul %12, %0, %cst {dimension_numbers = #tpu.dot_dimension_numbers<[1], [0], [0], [1], [0, 0, 1, 1], [], []>} : vector<32x24xf32>, vector<24x128xf32>, vector<32x128xf32> -> vector<32x128xf32>
    %14 = vector.broadcast %1 : vector<1x128xf32> to vector<32x128xf32>
    %15 = arith.addf %13, %14 : vector<32x128xf32>
    %16 = vector.shape_cast %15 : vector<32x128xf32> to vector<2x16x128xf32>
    %c0_9 = arith.constant 0 : index
    %c0_10 = arith.constant 0 : index
    %c0_11 = arith.constant 0 : index
    %17 = vector.load %arg3[%c0_9, %c0_10, %c0_11] : memref<2x16x128xf32, #tpu.memory_space<vmem>>, vector<2x16x128xf32>
    tpu.vector_store %arg3[%c0_9, %c0_10, %c0_11], %16 {strides = array<i32>} : memref<2x16x128xf32, #tpu.memory_space<vmem>>, vector<2x16x128xf32>,
    return
  }
  func.func @transform_0(%arg0: i32) -> (i32, i32, i32) {
    %c0_i32 = arith.constant 0 : i32
    %c0_i32_0 = arith.constant 0 : i32
    %c0_i32_1 = arith.constant 0 : i32
    return %arg0, %c0_i32, %c0_i32_0 : i32, i32, i32
  }
  func.func @transform_1(%arg0: i32) -> (i32, i32) {
    %c0_i32 = arith.constant 0 : i32
    %c0_i32_0 = arith.constant 0 : i32
    %c0_i32_1 = arith.constant 0 : i32
    return %c0_i32, %c0_i32_0 : i32, i32
  }
  func.func @transform_2(%arg0: i32) -> (i32, i32, i32) {
    %c0_i32 = arith.constant 0 : i32
    %c0_i32_0 = arith.constant 0 : i32
    %c0_i32_1 = arith.constant 0 : i32
    return %arg0, %c0_i32, %c0_i32_0 : i32, i32, i32
  }
}

</mosaic_0001>

<llo_original>
// kernel: tpu_custom_call.1
$region0: #{tpu_custom_call.1}
  #allocation0 [shape = 'u32[]', space=smem, size = 0x4, offset = 0x4, fixed_abs, tag = 'smem constant byte address 0x4 - core index']
  #allocation1 [shape = 'u32[72,128]{1,0:T(1,128)}', space=vmem, size = 0x9000, scoped, tag = 'internal scratch']
  %s0 = inlined_call_operand.vmem [shape: f32[2,16,8], index: 0, kind: input, shape index: {}]
  %s1 = inlined_call_operand.vmem [shape: f32[25,128], index: 1, kind: input, shape index: {}]
  %s2 = inlined_call_operand.hbm [shape: f32[2,16,128], index: 2, kind: output, shape index: {}]
  %s3 = sld [smem:[#allocation0]]
  $region18: #{tpu_custom_call.1} parent=0
    _
  %s5 = ssub.s32 1, %s3
  %s6 = scalar_select 0, %s5, %s3
  $region1: #{tpu_custom_call.1} parent=0
    #allocation2 [shape = 'u8[16384]{0}', space=vmem, size = 0x4000, scoped, tag = 'output window, operand 0, single buffered']
    #allocation3 [shape = 's32[1]{0}', space=sflag, size = 0x4, scoped, tag = 'scoped memory for tpu_custom_call.1']
    %7 = vsyncpa [#allocation3], 0
    // Predicated region
    $region2: #{tpu_custom_call.1} parent=1 // pred_check
      _
    $region3: #{tpu_custom_call.1} parent=1 // pred_check_branch
      %9 = sbr.rel (0) target = $region5
    $region4: #{tpu_custom_call.1} parent=1 // pred_region
      _
    $region5: #{tpu_custom_call.1} parent=1 // pred_fallthru
      _
    // Predicated region
    $region6: #{tpu_custom_call.1} parent=1 // pred_check
      _
    $region7: #{tpu_custom_call.1} parent=1 // pred_check_branch
      %11 = sbr.rel (0) target = $region9
    $region8: #{tpu_custom_call.1} parent=1 // pred_region
      _
    $region9: #{tpu_custom_call.1} parent=1 // pred_fallthru
      _
    %v12 = vld [vmem:[%s1] sm:$0xff]
    %v13 = vld [vmem:[%s1 + $0x8] sm:$0xff]
    %v14 = vld [vmem:[%s1 + $0x10] sm:$0xff]
    %v15 = vld [vmem:[%s1 + $0x18] sm:$0x1]
    %v16 = vld [vmem:[%s0] sm:$0xff]
    %v17 = vld [vmem:[%s0 + $0x8] sm:$0xff]
    %v18 = vrot.slane %v16, 7
    %v19 = vrot.slane %v17, 7
    %v20 = vlaneseq
    %v21 = vshrl.u32 %v20, 7
    %vm22 = vcmp.lt.s32.totalorder %v21, 1
    %v23 = vsel %vm22, %v18, %v19
    %v24 = vsel %vm22, %v19, %v18
    %v25 = vrot.slane %v16, 1
    %v26 = vrot.slane %v17, 1
    %vm27 = vcmp.lt.s32.totalorder %v21, 7
    %v28 = vsel %vm27, %v25, %v26
    %v29 = vsel %vm27, %v26, %v25
    %32 = vrot.lane.b32.xlu0 %v16, 8
    %v33 = vpop.permute.xlu0 %32
    %34 = vrot.lane.b32.xlu0 %v17, 8
    %v35 = vpop.permute.xlu0 %34
    %40 = vrot.lane.b32.xlu0 %v28, 16
    %v41 = vpop.permute.xlu0 %40
    %42 = vrot.lane.b32.xlu0 %v29, 16
    %v43 = vpop.permute.xlu0 %42
    %vm46 = vcmask 64512
    %v47 = vsel %vm46, %v24, %v33
    %v48 = vsel %vm46, %v23, %v35
    %vm49 = vcmask 130048
    %v50 = vsel %vm49, %v47, %v41
    %v51 = vsel %vm49, %v48, %v43
    %s52 = scalar_lea.vmem %s0, 16
    %v53 = vld [vmem:[%s52] sm:$0xff]
    %v54 = vld [vmem:[%s52 + $0x8] sm:$0xff]
    %v55 = vrot.slane %v53, 7
    %v56 = vrot.slane %v54, 7
    %v57 = vsel %vm22, %v55, %v56
    %v58 = vsel %vm22, %v56, %v55
    %v59 = vrot.slane %v53, 1
    %v60 = vrot.slane %v54, 1
    %v61 = vsel %vm27, %v59, %v60
    %v62 = vsel %vm27, %v60, %v59
    %65 = vrot.lane.b32.xlu0 %v53, 8
    %v66 = vpop.permute.xlu0 %65
    %67 = vrot.lane.b32.xlu0 %v54, 8
    %v68 = vpop.permute.xlu0 %67
    %73 = vrot.lane.b32.xlu0 %v61, 16
    %v74 = vpop.permute.xlu0 %73
    %75 = vrot.lane.b32.xlu0 %v62, 16
    %v76 = vpop.permute.xlu0 %75
    %v79 = vsel %vm46, %v58, %v66
    %v80 = vsel %vm46, %v57, %v68
    %v81 = vsel %vm49, %v79, %v74
    %v82 = vsel %vm49, %v80, %v76
    %v83 = vperm.slane %v15, 0
    %vm84 = vcmask 195584
    %v86 = vsel %vm84, %v50, 0
    %v89 = vsel %vm84, %v51, 0
    %v92 = vsel %vm84, %v81, 0
    %v95 = vsel %vm84, %v82, 0
    %97 = vmatpush.msra.mxu0 0.0
    %98 = vmatpush.msra.mxu0 0.0
    %99 = vmatpush.msra.mxu0 0.0
    %100 = vmatpush.msra.mxu0 0.0
    %101 = vmatpush.msra.mxu0 0.0
    %102 = vmatpush.msra.mxu0 0.0
    %103 = vmatpush.msra.mxu0 0.0
    %104 = vmatpush.msra.mxu0 0.0
    %105 = vmatpush.msra.mxu0 0.0
    %106 = vmatpush.msra.mxu0 0.0
    %107 = vmatpush.msra.mxu0 0.0
    %108 = vmatpush.msra.mxu0 0.0
    %109 = vmatpush.msra.mxu0 0.0
    %110 = vmatpush.msra.mxu0 %v14
    %111 = vmatpush.msra.mxu0 %v13
    %112 = vmatpush.msra.mxu0 %v12
    %113 = vmatmul.f32.gmra.mxu0 %v86
    %v114 = vpop.f32.mrf.mxu0
    %v115 = vadd.f32 %v83, %v114
    %116 = vmatmul.f32.gmra.mxu0 %v89
    %v117 = vpop.f32.mrf.mxu0
    %v118 = vadd.f32 %v83, %v117
    %119 = vmatmul.f32.gmra.mxu0 %v92
    %v120 = vpop.f32.mrf.mxu0
    %v121 = vadd.f32 %v83, %v120
    %122 = vmatmul.f32.gmra.mxu0 %v95
    %v123 = vpop.f32.mrf.mxu0
    %v124 = vadd.f32 %v83, %v123
    %125 = vdwg.mxu0
    %126 = vst [vmem:[#allocation2] sm:$0xff] %v115
    %127 = vst [vmem:[#allocation2 + $0x8] sm:$0xff] %v118
    %128 = vst [vmem:[#allocation2 + $0x10] sm:$0xff] %v121
    %129 = vst [vmem:[#allocation2 + $0x18] sm:$0xff] %v124
    // Predicated region
    $region10: #{tpu_custom_call.1} parent=1 // pred_check
      _
    $region11: #{tpu_custom_call.1} parent=1 // pred_check_branch
      %131 = sbr.rel (0) target = $region13
    $region12: #{tpu_custom_call.1} parent=1 // pred_region
      %133 = vsyncadd [#allocation3], 0
      %s134 = sshll.u32 [#allocation2], 4
      %s135 = int_to_ptr.vmem [resolvable:$true] %s134
      %s136 = sshll.u32 %s2, 4
      %s137 = int_to_ptr.hbm [resolvable:$true] %s136
      %142 = dma.vmem_to_hbm [thread:$0]  %s135, 512, %s137, [#allocation3], 128, 128, 8
    $region13: #{tpu_custom_call.1} parent=1 // pred_fallthru
      _
    // Predicated region
    $region14: #{tpu_custom_call.1} parent=1 // pred_check
      _
    $region15: #{tpu_custom_call.1} parent=1 // pred_check_branch
      %144 = sbr.rel (0) target = $region17
    $region16: #{tpu_custom_call.1} parent=1 // pred_region
      %146 = dma.done [#allocation3], 512
    $region17: #{tpu_custom_call.1} parent=1 // pred_fallthru
      _
    %147 = vsyncpa [#allocation3], 1

</llo_original>
